<compile_context>
chip_gen: v5e
topology: v5e:2x2
jax: 0.10.0
libtpu: 0.0.40
codegen_flags: <defaults>
</compile_context>

<pallas_src>
import functools

import jax
import jax.numpy as jnp
from jax import lax
from jax.experimental import pallas as pl
from jax.experimental.pallas import tpu as pltpu


def rnn_kernel(x_ref, w_ih_t_ref, w_hh_t_ref, bias_ref, out_ref, *, T, B):
    """out[t*B:(t+1)*B, :] = h_t = tanh(x_t @ W_ih^T + bias + h_{t-1} @ W_hh^T)."""
    H = w_hh_t_ref.shape[1]

    # (1) Time-parallel input projection: one MXU matmul over all T*B rows,
    #     fused bias (b_ih + b_hh) added once.  Stored straight into the
    #     output tile, which then serves as the per-step pre-activation
    #     scratch (no separate (T*B, H) value kept live in vregs).
    out_ref[...] = (
        jnp.dot(x_ref[...], w_ih_t_ref[...], preferred_element_type=jnp.float32)
        + bias_ref[...]
    )

    w_hh_t = w_hh_t_ref[...]  # (H, H) == W_hh^T, hoisted out of the time loop

    # (2) Recurrence.  h is the loop carry; each step = one (B,H)x(H,H) dot,
    #     one tanh (EUP), one direct (B,H) store.  Works for any B.
    def step(t, h):
        row = pl.multiple_of(t * B, B)
        acc = out_ref[pl.ds(row, B), :] + jnp.dot(
            h, w_hh_t, preferred_element_type=jnp.float32
        )
        h_new = jnp.tanh(acc)
        out_ref[pl.ds(row, B), :] = h_new
        return h_new

    h0 = jnp.zeros((B, H), jnp.float32)
    # T is small and static: unroll for scheduler visibility; the fori_loop
    # structure still bounds live ranges if T is grown / unroll is capped.
    lax.fori_loop(0, T, step, h0, unroll=True)


def rnn_forward(x, w_ih, w_hh, b_ih, b_hh):
    """x: (T, B, I) float32.  Returns (T*B, H) float32 (== PyTorch out.view(-1, H))."""
    T, B, I = x.shape
    H = w_hh.shape[0]

    x2 = x.reshape(T * B, I).astype(jnp.float32)      # time-parallel rows
    w_ih_t = w_ih.T.astype(jnp.float32)                # (I, H): plain (1,0) contraction
    w_hh_t = w_hh.T.astype(jnp.float32)                # (H, H) == W_hh^T
    bias = (b_ih + b_hh).reshape(1, H).astype(jnp.float32)  # fused bias row

    vmem = pl.BlockSpec(memory_space=pltpu.MemorySpace.VMEM)
    out = pl.pallas_call(
        functools.partial(rnn_kernel, T=T, B=B),
        out_shape=jax.ShapeDtypeStruct((T * B, H), jnp.float32),
        in_specs=[vmem, vmem, vmem, vmem],
        out_specs=vmem,
    )(x2, w_ih_t, w_hh_t, bias)
    return out


def rnn_reference(x, w_ih, w_hh, b_ih, b_hh):
    """Pure-JAX reference of the same recurrence (sanity check)."""
    T, B, _ = x.shape
    H = w_hh.shape[0]

    def step(h, x_t):
        h_new = jnp.tanh(x_t @ w_ih.T + b_ih + h @ w_hh.T + b_hh)
        return h_new, h_new

    h0 = jnp.zeros((B, H), jnp.float32)
    _, outs = lax.scan(step, h0, x)
    return outs.reshape(-1, H)


if __name__ == "__main__":
    # Module hyperparameters (from the PyTorch script)
    input_size = 4
    hidden_size = 4
    batch_size = 1
    num_layers = 1  # single layer handled

    seq_len = 8

    key = jax.random.PRNGKey(0)
    k_x, k1, k2, k3, k4 = jax.random.split(key, 5)

    # Deterministic parameter init (PyTorch uses U(-1/sqrt(H), 1/sqrt(H)))
    bound = 1.0 / (hidden_size ** 0.5)
    w_ih = jax.random.uniform(k1, (hidden_size, input_size), jnp.float32, -bound, bound)
    w_hh = jax.random.uniform(k2, (hidden_size, hidden_size), jnp.float32, -bound, bound)
    b_ih = jax.random.uniform(k3, (hidden_size,), jnp.float32, -bound, bound)
    b_hh = jax.random.uniform(k4, (hidden_size,), jnp.float32, -bound, bound)

    # Input: (seq_len, batch, input_size) — seq-first like torch.nn.RNN default
    x = jax.random.normal(k_x, (seq_len, batch_size, input_size), jnp.float32)

    out = rnn_forward(x, w_ih, w_hh, b_ih, b_hh)
    out = jax.block_until_ready(out)

    ref = rnn_reference(x, w_ih, w_hh, b_ih, b_hh)
    assert out.shape == (seq_len * batch_size, hidden_size)
    assert jnp.allclose(out, ref, atol=1e-5, rtol=1e-5)

    print("KERNEL_OK")
</pallas_src>

<mosaic_0001>
module attributes {stable_mosaic.version = 11 : i64} {
  func.func @rnn_kernel(%arg0: memref<8x4xf32, #tpu.memory_space<vmem>>, %arg1: memref<4x4xf32, #tpu.memory_space<vmem>>, %arg2: memref<4x4xf32, #tpu.memory_space<vmem>>, %arg3: memref<1x4xf32, #tpu.memory_space<vmem>>, %arg4: memref<8x4xf32, #tpu.memory_space<vmem>>) attributes {dimension_semantics = [], scalar_prefetch = 0 : i64, scratch_operands = 0 : i64, tpu.core_type = #tpu.core_type<tc>} {
    %c0 = arith.constant 0 : index
    %c0_0 = arith.constant 0 : index
    %0 = vector.load %arg0[%c0, %c0_0] : memref<8x4xf32, #tpu.memory_space<vmem>>, vector<8x4xf32>
    %c0_1 = arith.constant 0 : index
    %c0_2 = arith.constant 0 : index
    %1 = vector.load %arg1[%c0_1, %c0_2] : memref<4x4xf32, #tpu.memory_space<vmem>>, vector<4x4xf32>
    %cst = arith.constant dense<0.000000e+00> : vector<8x4xf32>
    %2 = tpu.matmul %0, %1, %cst {dimension_numbers = #tpu.dot_dimension_numbers<[1], [0], [0], [1], [0, 0, 1, 1], [], []>} : vector<8x4xf32>, vector<4x4xf32>, vector<8x4xf32> -> vector<8x4xf32>
    %c0_3 = arith.constant 0 : index
    %c0_4 = arith.constant 0 : index
    %3 = vector.load %arg3[%c0_3, %c0_4] : memref<1x4xf32, #tpu.memory_space<vmem>>, vector<1x4xf32>
    %4 = vector.broadcast %3 : vector<1x4xf32> to vector<8x4xf32>
    %5 = arith.addf %2, %4 : vector<8x4xf32>
    %c0_5 = arith.constant 0 : index
    %c0_6 = arith.constant 0 : index
    %6 = vector.load %arg4[%c0_5, %c0_6] : memref<8x4xf32, #tpu.memory_space<vmem>>, vector<8x4xf32>
    tpu.vector_store %arg4[%c0_5, %c0_6], %5 {strides = array<i32>} : memref<8x4xf32, #tpu.memory_space<vmem>>, vector<8x4xf32>,
    %c0_7 = arith.constant 0 : index
    %c0_8 = arith.constant 0 : index
    %7 = vector.load %arg2[%c0_7, %c0_8] : memref<4x4xf32, #tpu.memory_space<vmem>>, vector<4x4xf32>
    %cst_9 = arith.constant 0.000000e+00 : f32
    %8 = vector.broadcast %cst_9 : f32 to vector<1x4xf32>
    %c0_i32 = arith.constant 0 : i32
    %c1_i32 = arith.constant 1 : i32
    %9 = arith.muli %c0_i32, %c1_i32 : i32
    %10 = tpu.assume_multiple %9, 1 : i32
    %11 = arith.index_cast %10 : i32 to index
    %c0_10 = arith.constant 0 : index
    %12 = vector.load %arg4[%11, %c0_10] : memref<8x4xf32, #tpu.memory_space<vmem>>, vector<1x4xf32>
    %cst_11 = arith.constant dense<0.000000e+00> : vector<1x4xf32>
    %13 = tpu.matmul %8, %7, %cst_11 {dimension_numbers = #tpu.dot_dimension_numbers<[1], [0], [0], [1], [0, 0, 1, 1], [], []>} : vector<1x4xf32>, vector<4x4xf32>, vector<1x4xf32> -> vector<1x4xf32>
    %14 = arith.addf %12, %13 : vector<1x4xf32>
    %15 = math.tanh %14 : vector<1x4xf32>
    %16 = arith.index_cast %10 : i32 to index
    %c0_12 = arith.constant 0 : index
    %17 = vector.load %arg4[%16, %c0_12] : memref<8x4xf32, #tpu.memory_space<vmem>>, vector<1x4xf32>
    tpu.vector_store %arg4[%16, %c0_12], %15 {strides = array<i32>} : memref<8x4xf32, #tpu.memory_space<vmem>>, vector<1x4xf32>,
    %c1_i32_13 = arith.constant 1 : i32
    %c1_i32_14 = arith.constant 1 : i32
    %18 = arith.muli %c1_i32_13, %c1_i32_14 : i32
    %19 = tpu.assume_multiple %18, 1 : i32
    %20 = arith.index_cast %19 : i32 to index
    %c0_15 = arith.constant 0 : index
    %21 = vector.load %arg4[%20, %c0_15] : memref<8x4xf32, #tpu.memory_space<vmem>>, vector<1x4xf32>
    %cst_16 = arith.constant dense<0.000000e+00> : vector<1x4xf32>
    %22 = tpu.matmul %15, %7, %cst_16 {dimension_numbers = #tpu.dot_dimension_numbers<[1], [0], [0], [1], [0, 0, 1, 1], [], []>} : vector<1x4xf32>, vector<4x4xf32>, vector<1x4xf32> -> vector<1x4xf32>
    %23 = arith.addf %21, %22 : vector<1x4xf32>
    %24 = math.tanh %23 : vector<1x4xf32>
    %25 = arith.index_cast %19 : i32 to index
    %c0_17 = arith.constant 0 : index
    %26 = vector.load %arg4[%25, %c0_17] : memref<8x4xf32, #tpu.memory_space<vmem>>, vector<1x4xf32>
    tpu.vector_store %arg4[%25, %c0_17], %24 {strides = array<i32>} : memref<8x4xf32, #tpu.memory_space<vmem>>, vector<1x4xf32>,
    %c2_i32 = arith.constant 2 : i32
    %c1_i32_18 = arith.constant 1 : i32
    %27 = arith.muli %c2_i32, %c1_i32_18 : i32
    %28 = tpu.assume_multiple %27, 1 : i32
    %29 = arith.index_cast %28 : i32 to index
    %c0_19 = arith.constant 0 : index
    %30 = vector.load %arg4[%29, %c0_19] : memref<8x4xf32, #tpu.memory_space<vmem>>, vector<1x4xf32>
    %cst_20 = arith.constant dense<0.000000e+00> : vector<1x4xf32>
    %31 = tpu.matmul %24, %7, %cst_20 {dimension_numbers = #tpu.dot_dimension_numbers<[1], [0], [0], [1], [0, 0, 1, 1], [], []>} : vector<1x4xf32>, vector<4x4xf32>, vector<1x4xf32> -> vector<1x4xf32>
    %32 = arith.addf %30, %31 : vector<1x4xf32>
    %33 = math.tanh %32 : vector<1x4xf32>
    %34 = arith.index_cast %28 : i32 to index
    %c0_21 = arith.constant 0 : index
    %35 = vector.load %arg4[%34, %c0_21] : memref<8x4xf32, #tpu.memory_space<vmem>>, vector<1x4xf32>
    tpu.vector_store %arg4[%34, %c0_21], %33 {strides = array<i32>} : memref<8x4xf32, #tpu.memory_space<vmem>>, vector<1x4xf32>,
    %c3_i32 = arith.constant 3 : i32
    %c1_i32_22 = arith.constant 1 : i32
    %36 = arith.muli %c3_i32, %c1_i32_22 : i32
    %37 = tpu.assume_multiple %36, 1 : i32
    %38 = arith.index_cast %37 : i32 to index
    %c0_23 = arith.constant 0 : index
    %39 = vector.load %arg4[%38, %c0_23] : memref<8x4xf32, #tpu.memory_space<vmem>>, vector<1x4xf32>
    %cst_24 = arith.constant dense<0.000000e+00> : vector<1x4xf32>
    %40 = tpu.matmul %33, %7, %cst_24 {dimension_numbers = #tpu.dot_dimension_numbers<[1], [0], [0], [1], [0, 0, 1, 1], [], []>} : vector<1x4xf32>, vector<4x4xf32>, vector<1x4xf32> -> vector<1x4xf32>
    %41 = arith.addf %39, %40 : vector<1x4xf32>
    %42 = math.tanh %41 : vector<1x4xf32>
    %43 = arith.index_cast %37 : i32 to index
    %c0_25 = arith.constant 0 : index
    %44 = vector.load %arg4[%43, %c0_25] : memref<8x4xf32, #tpu.memory_space<vmem>>, vector<1x4xf32>
    tpu.vector_store %arg4[%43, %c0_25], %42 {strides = array<i32>} : memref<8x4xf32, #tpu.memory_space<vmem>>, vector<1x4xf32>,
    %c4_i32 = arith.constant 4 : i32
    %c1_i32_26 = arith.constant 1 : i32
    %45 = arith.muli %c4_i32, %c1_i32_26 : i32
    %46 = tpu.assume_multiple %45, 1 : i32
    %47 = arith.index_cast %46 : i32 to index
    %c0_27 = arith.constant 0 : index
    %48 = vector.load %arg4[%47, %c0_27] : memref<8x4xf32, #tpu.memory_space<vmem>>, vector<1x4xf32>
    %cst_28 = arith.constant dense<0.000000e+00> : vector<1x4xf32>
    %49 = tpu.matmul %42, %7, %cst_28 {dimension_numbers = #tpu.dot_dimension_numbers<[1], [0], [0], [1], [0, 0, 1, 1], [], []>} : vector<1x4xf32>, vector<4x4xf32>, vector<1x4xf32> -> vector<1x4xf32>
    %50 = arith.addf %48, %49 : vector<1x4xf32>
    %51 = math.tanh %50 : vector<1x4xf32>
    %52 = arith.index_cast %46 : i32 to index
    %c0_29 = arith.constant 0 : index
    %53 = vector.load %arg4[%52, %c0_29] : memref<8x4xf32, #tpu.memory_space<vmem>>, vector<1x4xf32>
    tpu.vector_store %arg4[%52, %c0_29], %51 {strides = array<i32>} : memref<8x4xf32, #tpu.memory_space<vmem>>, vector<1x4xf32>,
    %c5_i32 = arith.constant 5 : i32
    %c1_i32_30 = arith.constant 1 : i32
    %54 = arith.muli %c5_i32, %c1_i32_30 : i32
    %55 = tpu.assume_multiple %54, 1 : i32
    %56 = arith.index_cast %55 : i32 to index
    %c0_31 = arith.constant 0 : index
    %57 = vector.load %arg4[%56, %c0_31] : memref<8x4xf32, #tpu.memory_space<vmem>>, vector<1x4xf32>
    %cst_32 = arith.constant dense<0.000000e+00> : vector<1x4xf32>
    %58 = tpu.matmul %51, %7, %cst_32 {dimension_numbers = #tpu.dot_dimension_numbers<[1], [0], [0], [1], [0, 0, 1, 1], [], []>} : vector<1x4xf32>, vector<4x4xf32>, vector<1x4xf32> -> vector<1x4xf32>
    %59 = arith.addf %57, %58 : vector<1x4xf32>
    %60 = math.tanh %59 : vector<1x4xf32>
    %61 = arith.index_cast %55 : i32 to index
    %c0_33 = arith.constant 0 : index
    %62 = vector.load %arg4[%61, %c0_33] : memref<8x4xf32, #tpu.memory_space<vmem>>, vector<1x4xf32>
    tpu.vector_store %arg4[%61, %c0_33], %60 {strides = array<i32>} : memref<8x4xf32, #tpu.memory_space<vmem>>, vector<1x4xf32>,
    %c6_i32 = arith.constant 6 : i32
    %c1_i32_34 = arith.constant 1 : i32
    %63 = arith.muli %c6_i32, %c1_i32_34 : i32
    %64 = tpu.assume_multiple %63, 1 : i32
    %65 = arith.index_cast %64 : i32 to index
    %c0_35 = arith.constant 0 : index
    %66 = vector.load %arg4[%65, %c0_35] : memref<8x4xf32, #tpu.memory_space<vmem>>, vector<1x4xf32>
    %cst_36 = arith.constant dense<0.000000e+00> : vector<1x4xf32>
    %67 = tpu.matmul %60, %7, %cst_36 {dimension_numbers = #tpu.dot_dimension_numbers<[1], [0], [0], [1], [0, 0, 1, 1], [], []>} : vector<1x4xf32>, vector<4x4xf32>, vector<1x4xf32> -> vector<1x4xf32>
    %68 = arith.addf %66, %67 : vector<1x4xf32>
    %69 = math.tanh %68 : vector<1x4xf32>
    %70 = arith.index_cast %64 : i32 to index
    %c0_37 = arith.constant 0 : index
    %71 = vector.load %arg4[%70, %c0_37] : memref<8x4xf32, #tpu.memory_space<vmem>>, vector<1x4xf32>
    tpu.vector_store %arg4[%70, %c0_37], %69 {strides = array<i32>} : memref<8x4xf32, #tpu.memory_space<vmem>>, vector<1x4xf32>,
    %c7_i32 = arith.constant 7 : i32
    %c1_i32_38 = arith.constant 1 : i32
    %72 = arith.muli %c7_i32, %c1_i32_38 : i32
    %73 = tpu.assume_multiple %72, 1 : i32
    %74 = arith.index_cast %73 : i32 to index
    %c0_39 = arith.constant 0 : index
    %75 = vector.load %arg4[%74, %c0_39] : memref<8x4xf32, #tpu.memory_space<vmem>>, vector<1x4xf32>
    %cst_40 = arith.constant dense<0.000000e+00> : vector<1x4xf32>
    %76 = tpu.matmul %69, %7, %cst_40 {dimension_numbers = #tpu.dot_dimension_numbers<[1], [0], [0], [1], [0, 0, 1, 1], [], []>} : vector<1x4xf32>, vector<4x4xf32>, vector<1x4xf32> -> vector<1x4xf32>
    %77 = arith.addf %75, %76 : vector<1x4xf32>
    %78 = math.tanh %77 : vector<1x4xf32>
    %79 = arith.index_cast %73 : i32 to index
    %c0_41 = arith.constant 0 : index
    %80 = vector.load %arg4[%79, %c0_41] : memref<8x4xf32, #tpu.memory_space<vmem>>, vector<1x4xf32>
    tpu.vector_store %arg4[%79, %c0_41], %78 {strides = array<i32>} : memref<8x4xf32, #tpu.memory_space<vmem>>, vector<1x4xf32>,
    %c8_i32 = arith.constant 8 : i32
    return
  }
}

</mosaic_0001>

<llo_original>
// kernel: tpu_custom_call.1
$region0: #{tpu_custom_call.1}
  #allocation0 [shape = 'u32[]', space=smem, size = 0x4, offset = 0x4, fixed_abs, tag = 'smem constant byte address 0x4 - core index']
  #allocation1 [shape = 'u32[72,128]{1,0:T(1,128)}', space=vmem, size = 0x9000, scoped, tag = 'internal scratch']
  %s0 = inlined_call_operand.vmem [shape: f32[8,4], index: 0, kind: input, shape index: {}]
  %s1 = inlined_call_operand.vmem [shape: f32[4,4], index: 1, kind: input, shape index: {}]
  %s2 = inlined_call_operand.vmem [shape: f32[4,4], index: 2, kind: input, shape index: {}]
  %s3 = inlined_call_operand.vmem [shape: f32[1,4], index: 3, kind: input, shape index: {}]
  %s4 = inlined_call_operand.vmem [shape: f32[8,4], index: 4, kind: output, shape index: {}]
  %s5 = sld [smem:[#allocation0]]
  $region26: #{tpu_custom_call.1} parent=0
    _
  %s7 = ssub.s32 1, %s5
  %s8 = scalar_select 0, %s7, %s5
  // Predicated region
  $region2: #{tpu_custom_call.1} parent=0 // pred_check
    _
  $region3: #{tpu_custom_call.1} parent=0 // pred_check_branch
    %10 = sbr.rel (0) target = $region5
  $region4: #{tpu_custom_call.1} parent=0 // pred_region
    _
  $region5: #{tpu_custom_call.1} parent=0 // pred_fallthru
    _
  // Predicated region
  $region6: #{tpu_custom_call.1} parent=0 // pred_check
    _
  $region7: #{tpu_custom_call.1} parent=0 // pred_check_branch
    %12 = sbr.rel (0) target = $region9
  $region8: #{tpu_custom_call.1} parent=0 // pred_region
    _
  $region9: #{tpu_custom_call.1} parent=0 // pred_fallthru
    _
  // Predicated region
  $region10: #{tpu_custom_call.1} parent=0 // pred_check
    _
  $region11: #{tpu_custom_call.1} parent=0 // pred_check_branch
    %14 = sbr.rel (0) target = $region13
  $region12: #{tpu_custom_call.1} parent=0 // pred_region
    _
  $region13: #{tpu_custom_call.1} parent=0 // pred_fallthru
    _
  // Predicated region
  $region14: #{tpu_custom_call.1} parent=0 // pred_check
    _
  $region15: #{tpu_custom_call.1} parent=0 // pred_check_branch
    %16 = sbr.rel (0) target = $region17
  $region16: #{tpu_custom_call.1} parent=0 // pred_region
    _
  $region17: #{tpu_custom_call.1} parent=0 // pred_fallthru
    _
  %v17 = vld [vmem:[%s0] sm:$0xff]
  %v18 = vld [vmem:[%s1] sm:$0xf]
  %v19 = vld [vmem:[%s3] sm:$0x1]
  %v21 = vperm.slane %v19, 0
  %vm23 = vcmask 31744
  %v25 = vsel %vm23, %v17, 0
  %vm27 = vcmask 1043456
  %v29 = vsel %vm27, %v18, 0
  %31 = vmatpush.msra.mxu0 0.0
  %32 = vmatpush.msra.mxu0 0.0
  %33 = vmatpush.msra.mxu0 0.0
  %34 = vmatpush.msra.mxu0 0.0
  %35 = vmatpush.msra.mxu0 0.0
  %36 = vmatpush.msra.mxu0 0.0
  %37 = vmatpush.msra.mxu0 0.0
  %38 = vmatpush.msra.mxu0 0.0
  %39 = vmatpush.msra.mxu0 0.0
  %40 = vmatpush.msra.mxu0 0.0
  %41 = vmatpush.msra.mxu0 0.0
  %42 = vmatpush.msra.mxu0 0.0
  %43 = vmatpush.msra.mxu0 0.0
  %44 = vmatpush.msra.mxu0 0.0
  %45 = vmatpush.msra.mxu0 0.0
  %46 = vmatpush.msra.mxu0 %v29
  %47 = vmatmul.f32.gmra.mxu0 %v25
  %v48 = vpop.f32.mrf.mxu0
  %v49 = vadd.f32 %v21, %v48
  %50 = vdwg.mxu0
  %51 = vst.msk [vmem:[%s4] sm:$0xff] %vm23, %v49
  %v52 = vld [vmem:[%s2] sm:$0xf]
  %v53 = vld [vmem:[%s4] sm:$0x1]
  %v55 = vsel %vm23, 0.0, 0
  %v58 = vsel %vm27, %v52, 0
  %60 = vmatpush.msra.mxu0 0.0
  %61 = vmatpush.msra.mxu0 0.0
  %62 = vmatpush.msra.mxu0 0.0
  %63 = vmatpush.msra.mxu0 0.0
  %64 = vmatpush.msra.mxu0 0.0
  %65 = vmatpush.msra.mxu0 0.0
  %66 = vmatpush.msra.mxu0 0.0
  %67 = vmatpush.msra.mxu0 0.0
  %68 = vmatpush.msra.mxu0 0.0
  %69 = vmatpush.msra.mxu0 0.0
  %70 = vmatpush.msra.mxu0 0.0
  %71 = vmatpush.msra.mxu0 0.0
  %72 = vmatpush.msra.mxu0 0.0
  %73 = vmatpush.msra.mxu0 0.0
  %74 = vmatpush.msra.mxu0 0.0
  %75 = vmatpush.msra.mxu0 %v58
  %76 = vmatmul.f32.gmra.mxu0 %v55
  %v77 = vpop.f32.mrf.mxu0
  %v78 = vadd.f32 0.0, %v77
  %79 = vdwg.mxu0
  %v80 = vadd.f32 %v53, %v78
  %v81 = vtanh.pop %v80
  %vm82 = vcmask 24576
  %83 = vst.msk [vmem:[%s4] sm:$0x1] %vm82, %v81
  %s84 = scalar_lea.vmem %s4, 1
  %v85 = vld [vmem:[%s84] sm:$0x1]
  %v87 = vsel %vm23, %v81, 0
  %89 = vmatpush.msra.mxu0 0.0
  %90 = vmatpush.msra.mxu0 0.0
  %91 = vmatpush.msra.mxu0 0.0
  %92 = vmatpush.msra.mxu0 0.0
  %93 = vmatpush.msra.mxu0 0.0
  %94 = vmatpush.msra.mxu0 0.0
  %95 = vmatpush.msra.mxu0 0.0
  %96 = vmatpush.msra.mxu0 0.0
  %97 = vmatpush.msra.mxu0 0.0
  %98 = vmatpush.msra.mxu0 0.0
  %99 = vmatpush.msra.mxu0 0.0
  %100 = vmatpush.msra.mxu0 0.0
  %101 = vmatpush.msra.mxu0 0.0
  %102 = vmatpush.msra.mxu0 0.0
  %103 = vmatpush.msra.mxu0 0.0
  %104 = vmatpush.msra.mxu0 %v58
  %105 = vmatmul.f32.gmra.mxu0 %v87
  %v106 = vpop.f32.mrf.mxu0
  %v107 = vadd.f32 0.0, %v106
  %108 = vdwg.mxu0
  %v109 = vadd.f32 %v85, %v107
  %v110 = vtanh.pop %v109
  %111 = vst.msk [vmem:[%s84] sm:$0x1] %vm82, %v110
  %s112 = scalar_lea.vmem %s4, 2
  %v113 = vld [vmem:[%s112] sm:$0x1]
  %v115 = vsel %vm23, %v110, 0
  %117 = vmatpush.msra.mxu0 0.0
  %118 = vmatpush.msra.mxu0 0.0
  %119 = vmatpush.msra.mxu0 0.0
  %120 = vmatpush.msra.mxu0 0.0
  %121 = vmatpush.msra.mxu0 0.0
  %122 = vmatpush.msra.mxu0 0.0
  %123 = vmatpush.msra.mxu0 0.0
  %124 = vmatpush.msra.mxu0 0.0
  %125 = vmatpush.msra.mxu0 0.0
  %126 = vmatpush.msra.mxu0 0.0
  %127 = vmatpush.msra.mxu0 0.0
  %128 = vmatpush.msra.mxu0 0.0
  %129 = vmatpush.msra.mxu0 0.0
  %130 = vmatpush.msra.mxu0 0.0
  %131 = vmatpush.msra.mxu0 0.0
  %132 = vmatpush.msra.mxu0 %v58
  %133 = vmatmul.f32.gmra.mxu0 %v115
  %v134 = vpop.f32.mrf.mxu0
  %v135 = vadd.f32 0.0, %v134
  %136 = vdwg.mxu0
  %v137 = vadd.f32 %v113, %v135
  %v138 = vtanh.pop %v137
  %139 = vst.msk [vmem:[%s112] sm:$0x1] %vm82, %v138
  %s140 = scalar_lea.vmem %s4, 3
  %v141 = vld [vmem:[%s140] sm:$0x1]
  %v143 = vsel %vm23, %v138, 0
  %145 = vmatpush.msra.mxu0 0.0
  %146 = vmatpush.msra.mxu0 0.0
  %147 = vmatpush.msra.mxu0 0.0
  %148 = vmatpush.msra.mxu0 0.0
  %149 = vmatpush.msra.mxu0 0.0
  %150 = vmatpush.msra.mxu0 0.0
  %151 = vmatpush.msra.mxu0 0.0
  %152 = vmatpush.msra.mxu0 0.0
  %153 = vmatpush.msra.mxu0 0.0
  %154 = vmatpush.msra.mxu0 0.0
  %155 = vmatpush.msra.mxu0 0.0
  %156 = vmatpush.msra.mxu0 0.0
  %157 = vmatpush.msra.mxu0 0.0
  %158 = vmatpush.msra.mxu0 0.0
  %159 = vmatpush.msra.mxu0 0.0
  %160 = vmatpush.msra.mxu0 %v58
  %161 = vmatmul.f32.gmra.mxu0 %v143
  %v162 = vpop.f32.mrf.mxu0
  %v163 = vadd.f32 0.0, %v162
  %164 = vdwg.mxu0
  %v165 = vadd.f32 %v141, %v163
  %v166 = vtanh.pop %v165
  %167 = vst.msk [vmem:[%s140] sm:$0x1] %vm82, %v166
  %s168 = scalar_lea.vmem %s4, 4
  %v169 = vld [vmem:[%s168] sm:$0x1]
  %v171 = vsel %vm23, %v166, 0
  %173 = vmatpush.msra.mxu0 0.0
  %174 = vmatpush.msra.mxu0 0.0
  %175 = vmatpush.msra.mxu0 0.0
  %176 = vmatpush.msra.mxu0 0.0
  %177 = vmatpush.msra.mxu0 0.0
  %178 = vmatpush.msra.mxu0 0.0
  %179 = vmatpush.msra.mxu0 0.0
  %180 = vmatpush.msra.mxu0 0.0
  %181 = vmatpush.msra.mxu0 0.0
  %182 = vmatpush.msra.mxu0 0.0
  %183 = vmatpush.msra.mxu0 0.0
  %184 = vmatpush.msra.mxu0 0.0
  %185 = vmatpush.msra.mxu0 0.0
  %186 = vmatpush.msra.mxu0 0.0
  %187 = vmatpush.msra.mxu0 0.0
  %188 = vmatpush.msra.mxu0 %v58
  %189 = vmatmul.f32.gmra.mxu0 %v171
  %v190 = vpop.f32.mrf.mxu0
  %v191 = vadd.f32 0.0, %v190
  %192 = vdwg.mxu0
  %v193 = vadd.f32 %v169, %v191
  %v194 = vtanh.pop %v193
  %195 = vst.msk [vmem:[%s168] sm:$0x1] %vm82, %v194
  %s196 = scalar_lea.vmem %s4, 5
  %v197 = vld [vmem:[%s196] sm:$0x1]
  %v199 = vsel %vm23, %v194, 0
  %201 = vmatpush.msra.mxu0 0.0
  %202 = vmatpush.msra.mxu0 0.0
  %203 = vmatpush.msra.mxu0 0.0
  %204 = vmatpush.msra.mxu0 0.0
  %205 = vmatpush.msra.mxu0 0.0
  %206 = vmatpush.msra.mxu0 0.0
  %207 = vmatpush.msra.mxu0 0.0
  %208 = vmatpush.msra.mxu0 0.0
  %209 = vmatpush.msra.mxu0 0.0
  %210 = vmatpush.msra.mxu0 0.0
  %211 = vmatpush.msra.mxu0 0.0
  %212 = vmatpush.msra.mxu0 0.0
  %213 = vmatpush.msra.mxu0 0.0
  %214 = vmatpush.msra.mxu0 0.0
  %215 = vmatpush.msra.mxu0 0.0
  %216 = vmatpush.msra.mxu0 %v58
  %217 = vmatmul.f32.gmra.mxu0 %v199
  %v218 = vpop.f32.mrf.mxu0
  %v219 = vadd.f32 0.0, %v218
  %220 = vdwg.mxu0
  %v221 = vadd.f32 %v197, %v219
  %v222 = vtanh.pop %v221
  %223 = vst.msk [vmem:[%s196] sm:$0x1] %vm82, %v222
  %s224 = scalar_lea.vmem %s4, 6
  %v225 = vld [vmem:[%s224] sm:$0x1]
  %v227 = vsel %vm23, %v222, 0
  %229 = vmatpush.msra.mxu0 0.0
  %230 = vmatpush.msra.mxu0 0.0
  %231 = vmatpush.msra.mxu0 0.0
  %232 = vmatpush.msra.mxu0 0.0
  %233 = vmatpush.msra.mxu0 0.0
  %234 = vmatpush.msra.mxu0 0.0
  %235 = vmatpush.msra.mxu0 0.0
  %236 = vmatpush.msra.mxu0 0.0
  %237 = vmatpush.msra.mxu0 0.0
  %238 = vmatpush.msra.mxu0 0.0
  %239 = vmatpush.msra.mxu0 0.0
  %240 = vmatpush.msra.mxu0 0.0
  %241 = vmatpush.msra.mxu0 0.0
  %242 = vmatpush.msra.mxu0 0.0
  %243 = vmatpush.msra.mxu0 0.0
  %244 = vmatpush.msra.mxu0 %v58
  %245 = vmatmul.f32.gmra.mxu0 %v227
  %v246 = vpop.f32.mrf.mxu0
  %v247 = vadd.f32 0.0, %v246
  %248 = vdwg.mxu0
  %v249 = vadd.f32 %v225, %v247
  %v250 = vtanh.pop %v249
  %251 = vst.msk [vmem:[%s224] sm:$0x1] %vm82, %v250
  %s252 = scalar_lea.vmem %s4, 7
  %v253 = vld [vmem:[%s252] sm:$0x1]
  %v255 = vsel %vm23, %v250, 0
  %257 = vmatpush.msra.mxu0 0.0
  %258 = vmatpush.msra.mxu0 0.0
  %259 = vmatpush.msra.mxu0 0.0
  %260 = vmatpush.msra.mxu0 0.0
  %261 = vmatpush.msra.mxu0 0.0
  %262 = vmatpush.msra.mxu0 0.0
  %263 = vmatpush.msra.mxu0 0.0
  %264 = vmatpush.msra.mxu0 0.0
  %265 = vmatpush.msra.mxu0 0.0
  %266 = vmatpush.msra.mxu0 0.0
  %267 = vmatpush.msra.mxu0 0.0
  %268 = vmatpush.msra.mxu0 0.0
  %269 = vmatpush.msra.mxu0 0.0
  %270 = vmatpush.msra.mxu0 0.0
  %271 = vmatpush.msra.mxu0 0.0
  %272 = vmatpush.msra.mxu0 %v58
  %273 = vmatmul.f32.gmra.mxu0 %v255
  %v274 = vpop.f32.mrf.mxu0
  %v275 = vadd.f32 0.0, %v274
  %276 = vdwg.mxu0
  %v277 = vadd.f32 %v253, %v275
  %v278 = vtanh.pop %v277
  %279 = vst.msk [vmem:[%s252] sm:$0x1] %vm82, %v278
  // Predicated region
  $region18: #{tpu_custom_call.1} parent=0 // pred_check
    _
  $region19: #{tpu_custom_call.1} parent=0 // pred_check_branch
    %281 = sbr.rel (0) target = $region21
  $region20: #{tpu_custom_call.1} parent=0 // pred_region
    _
  $region21: #{tpu_custom_call.1} parent=0 // pred_fallthru
    _
  // Predicated region
  $region22: #{tpu_custom_call.1} parent=0 // pred_check
    _
  $region23: #{tpu_custom_call.1} parent=0 // pred_check_branch
    %283 = sbr.rel (0) target = $region25
  $region24: #{tpu_custom_call.1} parent=0 // pred_region
    _
  $region25: #{tpu_custom_call.1} parent=0 // pred_fallthru
    _

</llo_original>
